<compile_context>
chip_gen: v7x
topology: tpu7x:2x2x1
jax: 0.10.0
libtpu: 0.0.40
codegen_flags: <defaults>
</compile_context>

<pallas_src>
import functools

import jax
import jax.numpy as jnp
import numpy as np
from jax.experimental import pallas as pl
from jax.experimental.pallas import tpu as pltpu


def _temporal_shift_kernel(x_ref, o_ref, *, f0, f1):
    """One block = (b_blk, C, T, F). Pure slice-copy routing, no vector select."""
    b_blk, C, T, F = o_ref.shape
    dt = o_ref.dtype

    # Channels [0, f0): take x at t+1; last frame is zero.
    if f0 > 0:
        if T > 1:
            o_ref[:, :f0, : T - 1, :] = x_ref[:, :f0, 1:, :]
        o_ref[:, :f0, T - 1:, :] = jnp.zeros((b_blk, f0, 1, F), dt)

    # Channels [f0, f1): take x at t-1; first frame is zero.
    if f1 > f0:
        if T > 1:
            o_ref[:, f0:f1, 1:, :] = x_ref[:, f0:f1, : T - 1, :]
        o_ref[:, f0:f1, :1, :] = jnp.zeros((b_blk, f1 - f0, 1, F), dt)

    # Channels [f1, C): unchanged -- one wide, fully aligned copy.
    if C > f1:
        o_ref[:, f1:, :, :] = x_ref[:, f1:, :, :]


def temporal_shift(x, shift_div=8):
    """x: (B, C, T, F) -> (B, C, T, F), TSM temporal shift (native layout)."""
    B, C, T, F = x.shape
    fold = C // shift_div
    f0 = min(fold, C)
    f1 = min(2 * fold, C)

    # Batch items per grid step: biggest divisor of B whose block stays under
    # ~2 MiB (=> <= ~8 MiB VMEM with in+out double buffering, safe on all
    # generations including v7x's 64 MiB VMEM).
    itemsize = jnp.dtype(x.dtype).itemsize
    per_item = C * T * F * itemsize
    target = 2 * 1024 * 1024
    b_blk = 1
    for d in range(1, B + 1):
        if B % d == 0 and d * per_item <= target:
            b_blk = d

    compiler_kwargs = {}
    vmem_needed = 4 * b_blk * per_item  # in + out, double buffered
    if vmem_needed > 16 * 1024 * 1024:
        # Only triggers when a single batch item is already > ~4 MiB.
        compiler_kwargs["vmem_limit_bytes"] = min(vmem_needed + (4 << 20), 48 << 20)

    blk = (b_blk, C, T, F)
    kernel = functools.partial(_temporal_shift_kernel, f0=f0, f1=f1)

    return pl.pallas_call(
        kernel,
        out_shape=jax.ShapeDtypeStruct((B, C, T, F), x.dtype),
        grid_spec=pltpu.PrefetchScalarGridSpec(
            num_scalar_prefetch=0,
            grid=(B // b_blk,),
            in_specs=[pl.BlockSpec(blk, lambda i: (i, 0, 0, 0))],
            out_specs=pl.BlockSpec(blk, lambda i: (i, 0, 0, 0)),
        ),
        compiler_params=pltpu.CompilerParams(
            dimension_semantics=("parallel",), **compiler_kwargs
        ),
    )(x)


def _reference_numpy(x, shift_div=8):
    B, C, T, F = x.shape
    fold = C // shift_div
    t = np.transpose(x, (0, 2, 1, 3)).copy()          # (B, T, C, F)
    out = np.zeros_like(t)
    out[:, :-1, :fold, :] = t[:, 1:, :fold, :]
    out[:, 1:, fold:2 * fold, :] = t[:, :-1, fold:2 * fold, :]
    out[:, :, 2 * fold:, :] = t[:, :, 2 * fold:, :]
    return np.transpose(out, (0, 2, 1, 3))


if __name__ == "__main__":
    B, C, T, F = 2, 16, 8, 128
    shift_div = 8

    key = jax.random.PRNGKey(0)
    x = jax.random.normal(key, (B, C, T, F), dtype=jnp.float32)

    out = temporal_shift(x, shift_div=shift_div)
    out = jax.block_until_ready(out)

    ref = _reference_numpy(np.asarray(x), shift_div=shift_div)
    if not np.allclose(np.asarray(out), ref, atol=1e-6, rtol=1e-6):
        raise AssertionError("Pallas TemporalShift does not match reference")

    print("KERNEL_OK")
</pallas_src>

<mosaic_0001>
module attributes {stable_mosaic.version = 11 : i64} {
  func.func @_temporal_shift_kernel(%arg0: i32, %arg1: memref<2x16x8x128xf32, #tpu.memory_space<vmem>>, %arg2: memref<2x16x8x128xf32, #tpu.memory_space<vmem>>) attributes {dimension_semantics = [#tpu.dimension_semantics<parallel>], iteration_bounds = array<i64: 1>, scalar_prefetch = 0 : i64, scratch_operands = 0 : i64, tpu.core_type = #tpu.core_type<tc>, window_params = [{transform_indices = @transform_0, window_bounds = array<i64: 2, 16, 8, 128>}, {transform_indices = @transform_1, window_bounds = array<i64: 2, 16, 8, 128>}]} {
    %c0 = arith.constant 0 : index
    %c0_0 = arith.constant 0 : index
    %c1 = arith.constant 1 : index
    %c0_1 = arith.constant 0 : index
    %0 = vector.load %arg1[%c0, %c0_0, %c1, %c0_1] : memref<2x16x8x128xf32, #tpu.memory_space<vmem>>, vector<2x2x7x128xf32>
    %c0_2 = arith.constant 0 : index
    %c0_3 = arith.constant 0 : index
    %c0_4 = arith.constant 0 : index
    %c0_5 = arith.constant 0 : index
    %1 = vector.load %arg2[%c0_2, %c0_3, %c0_4, %c0_5] : memref<2x16x8x128xf32, #tpu.memory_space<vmem>>, vector<2x2x7x128xf32>
    tpu.vector_store %arg2[%c0_2, %c0_3, %c0_4, %c0_5], %0 {strides = array<i32>} : memref<2x16x8x128xf32, #tpu.memory_space<vmem>>, vector<2x2x7x128xf32>,
    %cst = arith.constant 0.000000e+00 : f32
    %2 = vector.broadcast %cst : f32 to vector<2x2x1x128xf32>
    %c0_6 = arith.constant 0 : index
    %c0_7 = arith.constant 0 : index
    %c7 = arith.constant 7 : index
    %c0_8 = arith.constant 0 : index
    %3 = vector.load %arg2[%c0_6, %c0_7, %c7, %c0_8] : memref<2x16x8x128xf32, #tpu.memory_space<vmem>>, vector<2x2x1x128xf32>
    tpu.vector_store %arg2[%c0_6, %c0_7, %c7, %c0_8], %2 {strides = array<i32>} : memref<2x16x8x128xf32, #tpu.memory_space<vmem>>, vector<2x2x1x128xf32>,
    %c0_9 = arith.constant 0 : index
    %c2 = arith.constant 2 : index
    %c0_10 = arith.constant 0 : index
    %c0_11 = arith.constant 0 : index
    %4 = vector.load %arg1[%c0_9, %c2, %c0_10, %c0_11] : memref<2x16x8x128xf32, #tpu.memory_space<vmem>>, vector<2x2x7x128xf32>
    %c0_12 = arith.constant 0 : index
    %c2_13 = arith.constant 2 : index
    %c1_14 = arith.constant 1 : index
    %c0_15 = arith.constant 0 : index
    %5 = vector.load %arg2[%c0_12, %c2_13, %c1_14, %c0_15] : memref<2x16x8x128xf32, #tpu.memory_space<vmem>>, vector<2x2x7x128xf32>
    tpu.vector_store %arg2[%c0_12, %c2_13, %c1_14, %c0_15], %4 {strides = array<i32>} : memref<2x16x8x128xf32, #tpu.memory_space<vmem>>, vector<2x2x7x128xf32>,
    %cst_16 = arith.constant 0.000000e+00 : f32
    %6 = vector.broadcast %cst_16 : f32 to vector<2x2x1x128xf32>
    %c0_17 = arith.constant 0 : index
    %c2_18 = arith.constant 2 : index
    %c0_19 = arith.constant 0 : index
    %c0_20 = arith.constant 0 : index
    %7 = vector.load %arg2[%c0_17, %c2_18, %c0_19, %c0_20] : memref<2x16x8x128xf32, #tpu.memory_space<vmem>>, vector<2x2x1x128xf32>
    tpu.vector_store %arg2[%c0_17, %c2_18, %c0_19, %c0_20], %6 {strides = array<i32>} : memref<2x16x8x128xf32, #tpu.memory_space<vmem>>, vector<2x2x1x128xf32>,
    %c0_21 = arith.constant 0 : index
    %c4 = arith.constant 4 : index
    %c0_22 = arith.constant 0 : index
    %c0_23 = arith.constant 0 : index
    %8 = vector.load %arg1[%c0_21, %c4, %c0_22, %c0_23] : memref<2x16x8x128xf32, #tpu.memory_space<vmem>>, vector<2x12x8x128xf32>
    %c0_24 = arith.constant 0 : index
    %c4_25 = arith.constant 4 : index
    %c0_26 = arith.constant 0 : index
    %c0_27 = arith.constant 0 : index
    %9 = vector.load %arg2[%c0_24, %c4_25, %c0_26, %c0_27] : memref<2x16x8x128xf32, #tpu.memory_space<vmem>>, vector<2x12x8x128xf32>
    tpu.vector_store %arg2[%c0_24, %c4_25, %c0_26, %c0_27], %8 {strides = array<i32>} : memref<2x16x8x128xf32, #tpu.memory_space<vmem>>, vector<2x12x8x128xf32>,
    return
  }
  func.func @transform_0(%arg0: i32) -> (i32, i32, i32, i32) {
    %c0_i32 = arith.constant 0 : i32
    %c0_i32_0 = arith.constant 0 : i32
    %c0_i32_1 = arith.constant 0 : i32
    %c0_i32_2 = arith.constant 0 : i32
    return %arg0, %c0_i32, %c0_i32_0, %c0_i32_1 : i32, i32, i32, i32
  }
  func.func @transform_1(%arg0: i32) -> (i32, i32, i32, i32) {
    %c0_i32 = arith.constant 0 : i32
    %c0_i32_0 = arith.constant 0 : i32
    %c0_i32_1 = arith.constant 0 : i32
    %c0_i32_2 = arith.constant 0 : i32
    return %arg0, %c0_i32, %c0_i32_0, %c0_i32_1 : i32, i32, i32, i32
  }
}

</mosaic_0001>

<llo_original>
// kernel: tpu_custom_call.1
$region0: #{tpu_custom_call.1}
  #allocation0 [shape = 'u32[]', space=smem, size = 0x4, offset = 0x4, fixed_abs, tag = 'smem constant byte address 0x4 - core index']
  #allocation1 [shape = 'u32[144,128]{1,0:T(1,128)}', space=vmem, size = 0x12000, scoped, tag = 'internal scratch']
  %s0 = inlined_call_operand.hbm [shape: f32[2,16,8,128], index: 0, kind: input, shape index: {}]
  %s1 = inlined_call_operand.hbm [shape: f32[2,16,8,128], index: 1, kind: output, shape index: {}]
  %s2 = sld [smem:[#allocation0]]
  $region18: #{tpu_custom_call.1} parent=0
    _
  %s4 = ssub.s32 1, %s2
  %s5 = scalar_select 0, %s4, %s2
  $region1: #{tpu_custom_call.1} parent=0
    #allocation2 [shape = 'u8[131072]{0}', space=vmem, size = 0x20000, scoped, tag = 'input window, operand 0, single buffered']
    #allocation3 [shape = 's32[1]{0}', space=sflag, size = 0x4, scoped, tag = 'scoped memory for tpu_custom_call.1']
    #allocation4 [shape = 's32[1]{0}', space=sflag, size = 0x4, scoped, tag = 'scoped memory for tpu_custom_call.1']
    #allocation5 [shape = 'u8[131072]{0}', space=vmem, size = 0x20000, scoped, tag = 'output window, operand 0, single buffered']
    %6 = vsyncpa [#allocation3], 0
    %7 = vsyncpa [#allocation4], 0
    // Predicated region
    $region2: #{tpu_custom_call.1} parent=1 // pred_check
      _
    $region3: #{tpu_custom_call.1} parent=1 // pred_check_branch
      %9 = sbr.rel (0) target = $region5
    $region4: #{tpu_custom_call.1} parent=1 // pred_region
      %s11 = ssub.s32 4096, 4096
      %12 = vsyncadd [#allocation3], %s11
      %s13 = sshll.u32 [#allocation2], 4
      %s14 = int_to_ptr.vmem [resolvable:$true] %s13
      %19 = dma.hbm_to_vmem [thread:$0]  %s0, 4096, %s14, [#allocation3], 128, 128, 8
    $region5: #{tpu_custom_call.1} parent=1 // pred_fallthru
      _
    // Predicated region
    $region6: #{tpu_custom_call.1} parent=1 // pred_check
      _
    $region7: #{tpu_custom_call.1} parent=1 // pred_check_branch
      %21 = sbr.rel (0) target = $region9
    $region8: #{tpu_custom_call.1} parent=1 // pred_region
      %22 = dma.done [#allocation3], 4096
    $region9: #{tpu_custom_call.1} parent=1 // pred_fallthru
      _
    %v23 = vld [vmem:[#allocation2 + $0x1] sm:$0x7f]
    %v24 = vld [vmem:[#allocation2 + $0x9] sm:$0x7f]
    %v25 = vld [vmem:[#allocation2 + $0x81] sm:$0x7f]
    %v26 = vld [vmem:[#allocation2 + $0x89] sm:$0x7f]
    %27 = vst [vmem:[#allocation5] sm:$0x7f] %v23
    %28 = vst [vmem:[#allocation5 + $0x8] sm:$0x7f] %v24
    %29 = vst [vmem:[#allocation5 + $0x80] sm:$0x7f] %v25
    %30 = vst [vmem:[#allocation5 + $0x88] sm:$0x7f] %v26
    %31 = vst [vmem:[#allocation5 + $0x7] sm:$0x1] 0.0
    %32 = vst [vmem:[#allocation5 + $0xf] sm:$0x1] 0.0
    %33 = vst [vmem:[#allocation5 + $0x87] sm:$0x1] 0.0
    %34 = vst [vmem:[#allocation5 + $0x8f] sm:$0x1] 0.0
    %s35 = scalar_lea.vmem [#allocation2], 16
    %v36 = vld [vmem:[%s35] sm:$0x7f]
    %v37 = vld [vmem:[%s35 + $0x8] sm:$0x7f]
    %v38 = vld [vmem:[%s35 + $0x80] sm:$0x7f]
    %v39 = vld [vmem:[%s35 + $0x88] sm:$0x7f]
    %s40 = scalar_lea.vmem [#allocation5], 16
    %41 = vst [vmem:[%s40 + $0x1] sm:$0x7f] %v36
    %42 = vst [vmem:[%s40 + $0x9] sm:$0x7f] %v37
    %43 = vst [vmem:[%s40 + $0x81] sm:$0x7f] %v38
    %44 = vst [vmem:[%s40 + $0x89] sm:$0x7f] %v39
    %45 = vst [vmem:[%s40] sm:$0x1] 0.0
    %46 = vst [vmem:[%s40 + $0x8] sm:$0x1] 0.0
    %47 = vst [vmem:[%s40 + $0x80] sm:$0x1] 0.0
    %48 = vst [vmem:[%s40 + $0x88] sm:$0x1] 0.0
    %s49 = scalar_lea.vmem [#allocation2], 32
    %v50 = vld [vmem:[%s49] sm:$0xff]
    %v51 = vld [vmem:[%s49 + $0x8] sm:$0xff]
    %v52 = vld [vmem:[%s49 + $0x10] sm:$0xff]
    %v53 = vld [vmem:[%s49 + $0x18] sm:$0xff]
    %v54 = vld [vmem:[%s49 + $0x20] sm:$0xff]
    %v55 = vld [vmem:[%s49 + $0x28] sm:$0xff]
    %v56 = vld [vmem:[%s49 + $0x30] sm:$0xff]
    %v57 = vld [vmem:[%s49 + $0x38] sm:$0xff]
    %v58 = vld [vmem:[%s49 + $0x40] sm:$0xff]
    %v59 = vld [vmem:[%s49 + $0x48] sm:$0xff]
    %v60 = vld [vmem:[%s49 + $0x50] sm:$0xff]
    %v61 = vld [vmem:[%s49 + $0x58] sm:$0xff]
    %v62 = vld [vmem:[%s49 + $0x80] sm:$0xff]
    %v63 = vld [vmem:[%s49 + $0x88] sm:$0xff]
    %v64 = vld [vmem:[%s49 + $0x90] sm:$0xff]
    %v65 = vld [vmem:[%s49 + $0x98] sm:$0xff]
    %v66 = vld [vmem:[%s49 + $0xa0] sm:$0xff]
    %v67 = vld [vmem:[%s49 + $0xa8] sm:$0xff]
    %v68 = vld [vmem:[%s49 + $0xb0] sm:$0xff]
    %v69 = vld [vmem:[%s49 + $0xb8] sm:$0xff]
    %v70 = vld [vmem:[%s49 + $0xc0] sm:$0xff]
    %v71 = vld [vmem:[%s49 + $0xc8] sm:$0xff]
    %v72 = vld [vmem:[%s49 + $0xd0] sm:$0xff]
    %v73 = vld [vmem:[%s49 + $0xd8] sm:$0xff]
    %s74 = scalar_lea.vmem [#allocation5], 32
    %75 = vst [vmem:[%s74] sm:$0xff] %v50
    %76 = vst [vmem:[%s74 + $0x8] sm:$0xff] %v51
    %77 = vst [vmem:[%s74 + $0x10] sm:$0xff] %v52
    %78 = vst [vmem:[%s74 + $0x18] sm:$0xff] %v53
    %79 = vst [vmem:[%s74 + $0x20] sm:$0xff] %v54
    %80 = vst [vmem:[%s74 + $0x28] sm:$0xff] %v55
    %81 = vst [vmem:[%s74 + $0x30] sm:$0xff] %v56
    %82 = vst [vmem:[%s74 + $0x38] sm:$0xff] %v57
    %83 = vst [vmem:[%s74 + $0x40] sm:$0xff] %v58
    %84 = vst [vmem:[%s74 + $0x48] sm:$0xff] %v59
    %85 = vst [vmem:[%s74 + $0x50] sm:$0xff] %v60
    %86 = vst [vmem:[%s74 + $0x58] sm:$0xff] %v61
    %87 = vst [vmem:[%s74 + $0x80] sm:$0xff] %v62
    %88 = vst [vmem:[%s74 + $0x88] sm:$0xff] %v63
    %89 = vst [vmem:[%s74 + $0x90] sm:$0xff] %v64
    %90 = vst [vmem:[%s74 + $0x98] sm:$0xff] %v65
    %91 = vst [vmem:[%s74 + $0xa0] sm:$0xff] %v66
    %92 = vst [vmem:[%s74 + $0xa8] sm:$0xff] %v67
    %93 = vst [vmem:[%s74 + $0xb0] sm:$0xff] %v68
    %94 = vst [vmem:[%s74 + $0xb8] sm:$0xff] %v69
    %95 = vst [vmem:[%s74 + $0xc0] sm:$0xff] %v70
    %96 = vst [vmem:[%s74 + $0xc8] sm:$0xff] %v71
    %97 = vst [vmem:[%s74 + $0xd0] sm:$0xff] %v72
    %98 = vst [vmem:[%s74 + $0xd8] sm:$0xff] %v73
    // Predicated region
    $region10: #{tpu_custom_call.1} parent=1 // pred_check
      _
    $region11: #{tpu_custom_call.1} parent=1 // pred_check_branch
      %100 = sbr.rel (0) target = $region13
    $region12: #{tpu_custom_call.1} parent=1 // pred_region
      %s102 = ssub.s32 4096, 4096
      %103 = vsyncadd [#allocation4], %s102
      %s104 = sshll.u32 [#allocation5], 4
      %s105 = int_to_ptr.vmem [resolvable:$true] %s104
      %110 = dma.vmem_to_hbm [thread:$0]  %s105, 4096, %s1, [#allocation4], 128, 128, 8
    $region13: #{tpu_custom_call.1} parent=1 // pred_fallthru
      _
    // Predicated region
    $region14: #{tpu_custom_call.1} parent=1 // pred_check
      _
    $region15: #{tpu_custom_call.1} parent=1 // pred_check_branch
      %112 = sbr.rel (0) target = $region17
    $region16: #{tpu_custom_call.1} parent=1 // pred_region
      %113 = dma.done [#allocation4], 4096
    $region17: #{tpu_custom_call.1} parent=1 // pred_fallthru
      _
    %114 = vsyncpa [#allocation3], 1
    %115 = vsyncpa [#allocation4], 1

</llo_original>
